<compile_context>
chip_gen: v7x
topology: tpu7x:2x2x1
jax: 0.10.0
libtpu: 0.0.40
codegen_flags: <defaults>
</compile_context>

<pallas_src>
import functools

import jax
import jax.numpy as jnp
from jax.experimental import pallas as pl
from jax.experimental.pallas import tpu as pltpu

_MIB = 1024 * 1024


def _round_up(x: int, m: int) -> int:
    return ((x + m - 1) // m) * m


def _largest_divisor_leq(n: int, cap: int) -> int:
    cap = max(1, min(n, cap))
    for d in range(cap, 0, -1):
        if n % d == 0:
            return d
    return 1


def _vmem_physical_bytes() -> int:
    # v5e/v6e: 128 MiB physical VMEM, v7x: 64 MiB.  Fall back conservatively.
    try:
        return int(pltpu.get_tpu_info().vmem_capacity_bytes)
    except Exception:
        return 64 * _MIB


def _linear_kernel(w_ref, b_ref, x_ref, o_ref, *, compute_dtype, precision):
    # w_ref: (pred_len, seq_len)   -- pinned (same block every grid step)
    # b_ref: (pred_len, 1)         -- pinned, broadcasts over the lane axis
    # x_ref: (TB, seq_len, tile)   -- TB batch rows (TB == 1 on the flattened path)
    # o_ref: (TB, pred_len, tile)
    w = w_ref[...].astype(compute_dtype)
    b = b_ref[...]
    for tb in range(x_ref.shape[0]):  # static, small unrolled loop over batch rows
        acc = jnp.dot(w, x_ref[tb].astype(compute_dtype),
                      preferred_element_type=jnp.float32, precision=precision)
        o_ref[tb] = (acc + b).astype(o_ref.dtype)


def linear_forward(x, weight, bias, *, use_bf16=True):
    """x: (batch, seq_len, channel); weight: (pred_len, seq_len); bias: (pred_len,)."""
    batch, seq_len, channel = x.shape
    pred_len = weight.shape[0]
    out_dtype = x.dtype
    out_item = jnp.dtype(out_dtype).itemsize

    compute_dtype = jnp.bfloat16 if use_bf16 else jnp.float32
    precision = None if use_bf16 else jax.lax.Precision.HIGHEST
    kernel = functools.partial(_linear_kernel,
                               compute_dtype=compute_dtype, precision=precision)

    b2d = bias.reshape(pred_len, 1).astype(jnp.float32)
    w_bytes = pred_len * seq_len * jnp.dtype(weight.dtype).itemsize
    bias_bytes = pred_len * 4

    vmem_phys = _vmem_physical_bytes()
    # Keep the (double-buffered) working set comfortably under physical VMEM
    # so pipelining stays alive on v7x (64 MiB) as well as v5e/v6e (128 MiB).
    budget = min(vmem_phys // 2, 64 * _MIB)
    avail = max(budget - w_bytes - bias_bytes, 1 * _MIB)
    # Multi-MB per-step blocks are already on the measured HBM-roofline plateau.
    target_step = 8 * _MIB

    flops = 2 * batch * channel * seq_len * pred_len
    bytes_accessed = int(x.size * x.dtype.itemsize
                         + weight.size * weight.dtype.itemsize
                         + bias.size * 4
                         + batch * pred_len * channel * out_item)
    cost = pl.CostEstimate(flops=flops, transcendentals=0,
                           bytes_accessed=bytes_accessed)

    if channel < 128:
        # ---- Lane-dense path for small channel counts (common LTSF case) ----
        # X2[s, b*C + c] = x[b, s, c]; the wrapper transpose is far cheaper than
        # masked partial stores on a <128-lane output.
        n = batch * channel
        x2 = jnp.transpose(x, (1, 0, 2)).reshape(seq_len, n)
        if use_bf16:
            x2 = x2.astype(jnp.bfloat16)  # halve HBM bytes of the streamed operand
        x_item = x2.dtype.itemsize

        if n <= 256:
            tile_n = n
            n_pad = n
        else:
            per_lane = seq_len * x_item + pred_len * out_item
            max_by_budget = avail // (2 * per_lane)
            max_by_target = max(128, target_step // per_lane)
            # <= ceil(n/2) so the grid has >= 2 steps (v7x megacore).
            cap = max(128, min(max_by_budget, max_by_target,
                               _round_up(-(-n // 2), 128)))
            tile_n = max(128, (cap // 128) * 128)
            n_pad = _round_up(n, tile_n)
            if n_pad != n:
                x2 = jnp.pad(x2, ((0, 0), (0, n_pad - n)))

        x3 = x2.reshape(1, seq_len, n_pad)
        grid = (n_pad // tile_n,)
        step_bytes = (w_bytes + bias_bytes
                      + 2 * (seq_len * tile_n * x_item + pred_len * tile_n * out_item))
        vmem_limit = int(min(max(step_bytes * 3 // 2, 16 * _MIB),
                             (vmem_phys * 9) // 10))

        out2 = pl.pallas_call(
            kernel,
            out_shape=jax.ShapeDtypeStruct((1, pred_len, n_pad), out_dtype),
            grid_spec=pltpu.PrefetchScalarGridSpec(
                num_scalar_prefetch=0,
                grid=grid,
                in_specs=[
                    pl.BlockSpec((pred_len, seq_len), lambda j: (0, 0)),
                    pl.BlockSpec((pred_len, 1), lambda j: (0, 0)),
                    # TODO(synk): on v5e, sweep pipeline_mode=pl.Buffered(3) here
                    # if DMA latency stays exposed after the larger tiles.
                    pl.BlockSpec((1, seq_len, tile_n), lambda j: (0, 0, j)),
                ],
                out_specs=pl.BlockSpec((1, pred_len, tile_n), lambda j: (0, 0, j)),
            ),
            compiler_params=pltpu.CompilerParams(
                dimension_semantics=("parallel",),
                vmem_limit_bytes=vmem_limit,
            ),
            cost_estimate=cost,
        )(weight, b2d, x3)

        out2 = out2.reshape(pred_len, n_pad)[:, :n]
        return out2.reshape(pred_len, batch, channel).transpose(1, 0, 2)

    # ---- Batched path: channel is already lane-dense (>= 128 lanes) ----
    x_item = x.dtype.itemsize
    per_c = seq_len * x_item + pred_len * out_item

    # Prefer the full (contiguous) channel extent; split only when channel is a
    # multiple of 128 and a full-channel block would blow the per-step budget.
    tile_c = channel
    if channel % 128 == 0:
        max_c_by_budget = max(128, avail // (2 * per_c))
        if channel > max_c_by_budget:
            tile_c = 128 * _largest_divisor_leq(channel // 128, max_c_by_budget // 128)
    num_c_tiles = channel // tile_c

    per_row = tile_c * per_c
    max_tb_by_budget = max(1, avail // (2 * per_row))
    max_tb_by_target = max(1, target_step // per_row)
    tb_cap = int(min(max_tb_by_budget, max_tb_by_target, batch))
    if num_c_tiles == 1 and batch >= 2:
        tb_cap = min(tb_cap, batch // 2)  # keep >= 2 grid steps for v7x megacore
    tb = _largest_divisor_leq(batch, tb_cap)
    grid = (batch // tb, num_c_tiles)

    step_bytes = w_bytes + bias_bytes + 2 * tb * per_row
    vmem_limit = int(min(max(step_bytes * 3 // 2, 16 * _MIB),
                         (vmem_phys * 9) // 10))

    return pl.pallas_call(
        kernel,
        out_shape=jax.ShapeDtypeStruct((batch, pred_len, channel), out_dtype),
        grid_spec=pltpu.PrefetchScalarGridSpec(
            num_scalar_prefetch=0,
            grid=grid,
            in_specs=[
                pl.BlockSpec((pred_len, seq_len), lambda b, c: (0, 0)),
                pl.BlockSpec((pred_len, 1), lambda b, c: (0, 0)),
                # TODO(synk): on v5e, sweep pipeline_mode=pl.Buffered(3) here.
                pl.BlockSpec((tb, seq_len, tile_c), lambda b, c: (b, 0, c)),
            ],
            out_specs=pl.BlockSpec((tb, pred_len, tile_c), lambda b, c: (b, 0, c)),
        ),
        compiler_params=pltpu.CompilerParams(
            dimension_semantics=("parallel", "parallel"),
            vmem_limit_bytes=vmem_limit,
        ),
        cost_estimate=cost,
    )(weight, b2d, x)


if __name__ == "__main__":
    key = jax.random.PRNGKey(0)

    def make_inputs(k, batch, seq_len, pred_len, channel):
        kx, kw, kb = jax.random.split(k, 3)
        x = jax.random.normal(kx, (batch, seq_len, channel), dtype=jnp.float32)
        bound = 1.0 / jnp.sqrt(jnp.float32(seq_len))
        w = jax.random.uniform(kw, (pred_len, seq_len), minval=-bound, maxval=bound,
                               dtype=jnp.float32)
        b = jax.random.uniform(kb, (pred_len,), minval=-bound, maxval=bound,
                               dtype=jnp.float32)
        return x, w, b

    def reference(x, w, b):
        return jnp.einsum("bsc,ps->bpc", x, w) + b[None, :, None]

    # Case 1: small channel (lane-dense flattened path), small shapes from the module.
    k1, k2 = jax.random.split(key)
    x1, w1, b1 = make_inputs(k1, batch=2, seq_len=16, pred_len=8, channel=4)

    out_bf16 = jax.block_until_ready(linear_forward(x1, w1, b1, use_bf16=True))
    ref1 = reference(x1, w1, b1)
    assert out_bf16.shape == (2, 8, 4)
    assert jnp.allclose(out_bf16, ref1, atol=5e-2, rtol=5e-2)

    out_f32 = jax.block_until_ready(linear_forward(x1, w1, b1, use_bf16=False))
    assert jnp.allclose(out_f32, ref1, atol=1e-5, rtol=1e-5)

    # Case 2: channel >= 128 exercises the batched path (multi-batch block, 2 grid steps).
    x2, w2, b2 = make_inputs(k2, batch=4, seq_len=16, pred_len=8, channel=128)
    out2 = jax.block_until_ready(linear_forward(x2, w2, b2, use_bf16=True))
    ref2 = reference(x2, w2, b2)
    assert out2.shape == (4, 8, 128)
    assert jnp.allclose(out2, ref2, atol=5e-2, rtol=5e-2)

    print("KERNEL_OK")
</pallas_src>

<mosaic_0001>
module attributes {stable_mosaic.version = 11 : i64} {
  func.func @_linear_kernel(%arg0: i32, %arg1: memref<8x16xf32, #tpu.memory_space<vmem>>, %arg2: memref<8x1xf32, #tpu.memory_space<vmem>>, %arg3: memref<1x16x8xbf16, #tpu.memory_space<vmem>>, %arg4: memref<1x8x8xf32, #tpu.memory_space<vmem>>) attributes {dimension_semantics = [#tpu.dimension_semantics<parallel>], iteration_bounds = array<i64: 1>, scalar_prefetch = 0 : i64, scratch_operands = 0 : i64, tpu.core_type = #tpu.core_type<tc>, window_params = [{pipeline_mode = #tpu.pipeline_mode<synchronous>, transform_indices = @transform_0, window_bounds = array<i64: 8, 16>}, {pipeline_mode = #tpu.pipeline_mode<synchronous>, transform_indices = @transform_1, window_bounds = array<i64: 8, 1>}, {transform_indices = @transform_2, window_bounds = array<i64: 1, 16, 8>}, {transform_indices = @transform_3, window_bounds = array<i64: 1, 8, 8>}]} {
    %c0 = arith.constant 0 : index
    %c0_0 = arith.constant 0 : index
    %0 = vector.load %arg1[%c0, %c0_0] : memref<8x16xf32, #tpu.memory_space<vmem>>, vector<8x16xf32>
    %1 = arith.truncf %0 : vector<8x16xf32> to vector<8x16xbf16>
    %c0_1 = arith.constant 0 : index
    %c0_2 = arith.constant 0 : index
    %2 = vector.load %arg2[%c0_1, %c0_2] : memref<8x1xf32, #tpu.memory_space<vmem>>, vector<8x1xf32>
    %c0_3 = arith.constant 0 : index
    %c0_4 = arith.constant 0 : index
    %c0_5 = arith.constant 0 : index
    %3 = vector.load %arg3[%c0_3, %c0_4, %c0_5] : memref<1x16x8xbf16, #tpu.memory_space<vmem>>, vector<1x16x8xbf16>
    %4 = vector.shape_cast %3 : vector<1x16x8xbf16> to vector<16x8xbf16>
    %cst = arith.constant dense<0.000000e+00> : vector<8x8xf32>
    %5 = tpu.matmul %1, %4, %cst {dimension_numbers = #tpu.dot_dimension_numbers<[1], [0], [0], [1], [0, 0, 1, 1], [], []>} : vector<8x16xbf16>, vector<16x8xbf16>, vector<8x8xf32> -> vector<8x8xf32>
    %6 = vector.broadcast %2 : vector<8x1xf32> to vector<8x8xf32>
    %7 = arith.addf %5, %6 : vector<8x8xf32>
    %c0_6 = arith.constant 0 : index
    %c0_7 = arith.constant 0 : index
    %c0_8 = arith.constant 0 : index
    %8 = vector.load %arg4[%c0_6, %c0_7, %c0_8] : memref<1x8x8xf32, #tpu.memory_space<vmem>>, vector<1x8x8xf32>
    %9 = vector.shape_cast %8 : vector<1x8x8xf32> to vector<8x8xf32>
    %10 = vector.shape_cast %7 : vector<8x8xf32> to vector<1x8x8xf32>
    tpu.vector_store %arg4[%c0_6, %c0_7, %c0_8], %10 {strides = array<i32>} : memref<1x8x8xf32, #tpu.memory_space<vmem>>, vector<1x8x8xf32>,
    return
  }
  func.func @transform_0(%arg0: i32) -> (i32, i32) {
    %c0_i32 = arith.constant 0 : i32
    %c0_i32_0 = arith.constant 0 : i32
    %c0_i32_1 = arith.constant 0 : i32
    return %c0_i32, %c0_i32_0 : i32, i32
  }
  func.func @transform_1(%arg0: i32) -> (i32, i32) {
    %c0_i32 = arith.constant 0 : i32
    %c0_i32_0 = arith.constant 0 : i32
    %c0_i32_1 = arith.constant 0 : i32
    return %c0_i32, %c0_i32_0 : i32, i32
  }
  func.func @transform_2(%arg0: i32) -> (i32, i32, i32) {
    %c0_i32 = arith.constant 0 : i32
    %c0_i32_0 = arith.constant 0 : i32
    %c0_i32_1 = arith.constant 0 : i32
    return %c0_i32, %c0_i32_0, %arg0 : i32, i32, i32
  }
  func.func @transform_3(%arg0: i32) -> (i32, i32, i32) {
    %c0_i32 = arith.constant 0 : i32
    %c0_i32_0 = arith.constant 0 : i32
    %c0_i32_1 = arith.constant 0 : i32
    return %c0_i32, %c0_i32_0, %arg0 : i32, i32, i32
  }
}

</mosaic_0001>

<llo_original>
// kernel: tpu_custom_call.1
$region0: #{tpu_custom_call.1}
  #allocation0 [shape = 'u32[]', space=smem, size = 0x4, offset = 0x4, fixed_abs, tag = 'smem constant byte address 0x4 - core index']
  #allocation1 [shape = 'u32[144,128]{1,0:T(1,128)}', space=vmem, size = 0x12000, scoped, tag = 'internal scratch']
  %s0 = inlined_call_operand.vmem [shape: f32[8,16], index: 0, kind: input, shape index: {}]
  %s1 = inlined_call_operand.vmem [shape: f32[8,1], index: 1, kind: input, shape index: {}]
  %s2 = inlined_call_operand.vmem [shape: bf16[1,16,8], index: 2, kind: input, shape index: {}]
  %s3 = inlined_call_operand.hbm [shape: f32[1,8,8], index: 3, kind: output, shape index: {}]
  %s4 = sld [smem:[#allocation0]]
  $region22: #{tpu_custom_call.1} parent=0
    _
  %s6 = ssub.s32 1, %s4
  %s7 = scalar_select 0, %s6, %s4
  $region1: #{tpu_custom_call.1} parent=0
    #allocation2 [shape = 'u8[4096]{0}', space=vmem, size = 0x1000, scoped, tag = 'output window, operand 0, single buffered']
    #allocation3 [shape = 's32[1]{0}', space=sflag, size = 0x4, scoped, tag = 'scoped memory for tpu_custom_call.1']
    %8 = vsyncpa [#allocation3], 0
    // Predicated region
    $region2: #{tpu_custom_call.1} parent=1 // pred_check
      _
    $region3: #{tpu_custom_call.1} parent=1 // pred_check_branch
      %10 = sbr.rel (0) target = $region5
    $region4: #{tpu_custom_call.1} parent=1 // pred_region
      _
    $region5: #{tpu_custom_call.1} parent=1 // pred_fallthru
      _
    // Predicated region
    $region6: #{tpu_custom_call.1} parent=1 // pred_check
      _
    $region7: #{tpu_custom_call.1} parent=1 // pred_check_branch
      %12 = sbr.rel (0) target = $region9
    $region8: #{tpu_custom_call.1} parent=1 // pred_region
      _
    $region9: #{tpu_custom_call.1} parent=1 // pred_fallthru
      _
    // Predicated region
    $region10: #{tpu_custom_call.1} parent=1 // pred_check
      _
    $region11: #{tpu_custom_call.1} parent=1 // pred_check_branch
      %14 = sbr.rel (0) target = $region13
    $region12: #{tpu_custom_call.1} parent=1 // pred_region
      _
    $region13: #{tpu_custom_call.1} parent=1 // pred_fallthru
      _
    %v16 = vld [vmem:[%s0] sm:$0xff]
    %v17 = vpack.c.bf16 %v16, %v16
    %v18 = vld [vmem:[%s1] sm:$0xff]
    %v19 = vld [vmem:[%s2] sm:$0xf]
    %v20 = vld [vmem:[%s2 + $0x4] sm:$0xf]
    %22 = vset.pattern.permute.xlu0 0
    %23 = vperm.xlu0 %22, %v18
    %v24 = vpop.permute.xlu0 %23
    %v28 = vunpack.c.l.b16 %v19
    %v29 = vunpack.c.l.b16 %v20
    %v30 = vpack.c.b16 %v29, %v28
    %vm32 = vcmask 130048
    %v34 = vsel %vm32, %v17, 0
    %36 = vmatprep.subr.bf16.mxu0 0
    %37 = vmatpush1.bf16.msra.mxu0 %v30
    %38 = vmatprep.subr.bf16.mxu0 0
    %39 = vmatpush1.bf16.msra.mxu0 0
    %40 = vmatprep.subr.bf16.mxu0 0
    %41 = vmatpush1.bf16.msra.mxu0 0
    %42 = vmatprep.subr.bf16.mxu0 0
    %43 = vmatpush1.bf16.msra.mxu0 0
    %44 = vmatprep.subr.bf16.mxu0 0
    %45 = vmatpush1.bf16.msra.mxu0 0
    %46 = vmatprep.subr.bf16.mxu0 0
    %47 = vmatpush1.bf16.msra.mxu0 0
    %48 = vmatprep.subr.bf16.mxu0 0
    %49 = vmatpush1.bf16.msra.mxu0 0
    %50 = vmatprep.subr.bf16.mxu0 0
    %51 = vmatpush1.bf16.msra.mxu0 0
    %52 = vmatprep.subr.bf16.mxu0 0
    %53 = vmatpush1.bf16.msra.mxu0 0
    %54 = vmatprep.subr.bf16.mxu0 0
    %55 = vmatpush1.bf16.msra.mxu0 0
    %56 = vmatprep.subr.bf16.mxu0 0
    %57 = vmatpush1.bf16.msra.mxu0 0
    %58 = vmatprep.subr.bf16.mxu0 0
    %59 = vmatpush1.bf16.msra.mxu0 0
    %60 = vmatprep.subr.bf16.mxu0 0
    %61 = vmatpush1.bf16.msra.mxu0 0
    %62 = vmatprep.subr.bf16.mxu0 0
    %63 = vmatpush1.bf16.msra.mxu0 0
    %64 = vmatprep.subr.bf16.mxu0 0
    %65 = vmatpush1.bf16.msra.mxu0 0
    %66 = vmatprep.subr.bf16.mxu0 0
    %67 = vmatpush1.bf16.msra.mxu0 0
    %68 = vmatprep.mubr.bf16.mxu0 0
    %69 = vmatmul.mubr.bf16.gmra.mrb[0].mxu0 %v34
    %v70 = vpop.f32.mrb[0].mxu0
    %v71 = vadd.f32 %v24, %v70
    %v72 = vpop.f32.mrb[0].mxu0
    %v73 = vpop.f32.mrb[0].mxu0
    %v74 = vpop.f32.mrb[0].mxu0
    %75 = vdwg.mxu0
    %vm76 = vcmask 64512
    %77 = vst.msk [vmem:[#allocation2] sm:$0xff] %vm76, %v71
    // Predicated region
    $region14: #{tpu_custom_call.1} parent=1 // pred_check
      _
    $region15: #{tpu_custom_call.1} parent=1 // pred_check_branch
      %79 = sbr.rel (0) target = $region17
    $region16: #{tpu_custom_call.1} parent=1 // pred_region
      %s81 = ssub.s32 128, 128
      %82 = vsyncadd [#allocation3], %s81
      %s84 = sshll.u32 [#allocation2], 4
      %s85 = int_to_ptr.vmem [resolvable:$true] %s84
      %87 = dma.vmem_to_hbm [thread:$0]  %s85, 128, %s3, [#allocation3]
    $region17: #{tpu_custom_call.1} parent=1 // pred_fallthru
      _
    // Predicated region
    $region18: #{tpu_custom_call.1} parent=1 // pred_check
      _
    $region19: #{tpu_custom_call.1} parent=1 // pred_check_branch
      %89 = sbr.rel (0) target = $region21
    $region20: #{tpu_custom_call.1} parent=1 // pred_region
      %90 = dma.done [#allocation3], 128
    $region21: #{tpu_custom_call.1} parent=1 // pred_fallthru
      _
    %91 = vsyncpa [#allocation3], 1

</llo_original>
